<compile_context>
chip_gen: v7x
topology: tpu7x:2x2x1
jax: 0.10.0
libtpu: 0.0.40
codegen_flags: <defaults>
</compile_context>

<pallas_src>
import functools

import jax
import jax.numpy as jnp
from jax.experimental import pallas as pl
from jax.experimental.pallas import tpu as pltpu


def _round_up(x, m):
    return ((x + m - 1) // m) * m


def critic_kernel(state_ref, action_ref, w1s_ref, w1a_ref, b1_ref,
                  w2_ref, b2_ref, w3_ref, b3_ref, q_ref,
                  *, compute_dtype, action_fma):
    cd = compute_dtype

    # ---- Layer 1: fused concat  cat([s, a]) @ W1 == s @ W1[:S] + a @ W1[S:]
    h1 = jnp.dot(state_ref[...], w1s_ref[...],
                 preferred_element_type=jnp.float32)          # MXU, f32 acc
    if action_fma:
        # A is tiny (1-2): a K=A MXU pass wastes a whole push per 8 rows.
        # Do it as an unrolled VPU broadcast FMA in f32 instead.
        a = action_ref[...].astype(jnp.float32)               # [TB, A]
        w1a = w1a_ref[...].astype(jnp.float32)                 # [A, H]
        for j in range(a.shape[1]):
            h1 = h1 + a[:, j:j + 1] * w1a[j:j + 1, :]
    else:
        h1 = h1 + jnp.dot(action_ref[...], w1a_ref[...],
                          preferred_element_type=jnp.float32)
    h1 = jnp.maximum(h1 + b1_ref[...], 0.0)                    # f32 bias + ReLU (VPU)

    # ---- Layer 2
    h2 = jnp.dot(h1.astype(cd), w2_ref[...],
                 preferred_element_type=jnp.float32)           # MXU, f32 acc
    h2 = jnp.maximum(h2 + b2_ref[...], 0.0)                    # f32 bias + ReLU

    # ---- Layer 3 (H -> 1): VPU multiply + XLU lane-reduce instead of an
    # N=1 MXU matmul (1/128 lane utilization).
    q = jnp.sum(h2 * w3_ref[...], axis=-1, keepdims=True)      # [TB, 1] f32
    q_ref[...] = q + b3_ref[0, 0]                              # scalar bias from SMEM


def critic_forward(state, action, params, *, tile_b=None,
                   matmul_dtype=jnp.bfloat16, action_fma_max=8):
    """Critic forward pass.  state: [B, S], action: [B, A] -> q: [B, 1] (f32)."""
    w1s, w1a, b1, w2, b2, w3, b3 = params
    B, S = state.shape
    A = action.shape[1]
    H = w1s.shape[1]

    md = jnp.dtype(matmul_dtype)
    use_fma = A <= int(action_fma_max)

    # MXU operand dtype: cast once in the wrapper (halves activation DMA when
    # bf16).  Biases / final projection stay f32 (VPU path stays f32, v5e-safe).
    state_c = state.astype(md)
    w1s_c = w1s.astype(md)
    w2_c = w2.astype(md)
    if use_fma:
        action_c = action.astype(jnp.float32)       # consumed on the VPU
        w1a_c = w1a.astype(jnp.float32)
    else:
        action_c = action.astype(md)
        w1a_c = w1a.astype(md)
    b1_r = b1.astype(jnp.float32).reshape(1, H)
    b2_r = b2.astype(jnp.float32).reshape(1, H)
    w3_row = w3.astype(jnp.float32).reshape(1, H)   # [H,1] -> row [1,H]
    b3_s = b3.astype(jnp.float32).reshape(1, 1)     # scalar, lives in SMEM

    # ---- Batch tile selection -------------------------------------------------
    # Large default tile amortizes per-grid-step overhead (~600 cycles/step);
    # clamp to the batch; keep >= 2 grid steps for megacore when B is large.
    if tile_b is None:
        tile_b = 2048
    tile_b = _round_up(max(8, min(int(tile_b), 8192)), 8)
    tile_b = min(tile_b, _round_up(B, 8))
    if B >= 512 and -(-B // tile_b) < 2:
        tile_b = _round_up(-(-B // 2), 8)           # split -> 2 steps (v7x: 2 TCs)
    num_blocks = -(-B // tile_b)                    # cdiv; no jnp.pad / HBM copy
    grid = (num_blocks,)

    const = lambda i: (0, 0)                        # weights VMEM-resident

    # ---- Advisory cost estimate (includes output bytes) -----------------------
    flops = 2 * B * (S * H + A * H + H * H + H)
    w_bytes = sum(int(x.size) * int(x.dtype.itemsize)
                  for x in (w1s_c, w1a_c, b1_r, w2_c, b2_r, w3_row, b3_s))
    bytes_accessed = (B * (S * state_c.dtype.itemsize + A * action_c.dtype.itemsize)
                      + w_bytes + B * 4)

    # ---- VMEM budget (double-buffered blocks + resident weights + f32 acts) ---
    blk_in = tile_b * (S * state_c.dtype.itemsize + A * action_c.dtype.itemsize)
    blk_out = tile_b * 4
    act_bytes = 2 * tile_b * H * 4                  # h1 / h2 in f32
    vmem_est = 2 * w_bytes + 2 * blk_in + 2 * blk_out + act_bytes + (1 << 20)
    vmem_limit = int(min(64 << 20, max(32 << 20, 2 * vmem_est)))

    kernel = functools.partial(critic_kernel, compute_dtype=md,
                               action_fma=use_fma)

    q = pl.pallas_call(
        kernel,
        out_shape=jax.ShapeDtypeStruct((B, 1), jnp.float32),
        grid=grid,
        in_specs=[
            pl.BlockSpec((tile_b, S), lambda i: (i, 0)),      # state block
            pl.BlockSpec((tile_b, A), lambda i: (i, 0)),      # action block
            pl.BlockSpec((S, H), const),                      # W1[:S]
            pl.BlockSpec((A, H), const),                      # W1[S:]
            pl.BlockSpec((1, H), const),                      # b1
            pl.BlockSpec((H, H), const),                      # W2
            pl.BlockSpec((1, H), const),                      # b2
            pl.BlockSpec((1, H), const),                      # W3 as a row
            pl.BlockSpec(memory_space=pltpu.MemorySpace.SMEM),  # b3 scalar
        ],
        out_specs=pl.BlockSpec((tile_b, 1), lambda i: (i, 0)),
        compiler_params=pltpu.CompilerParams(
            dimension_semantics=("parallel",),
            vmem_limit_bytes=vmem_limit,
        ),
        cost_estimate=pl.CostEstimate(
            flops=flops, transcendentals=0, bytes_accessed=bytes_accessed),
    )(state_c, action_c, w1s_c, w1a_c, b1_r, w2_c, b2_r, w3_row, b3_s)

    return q


def init_critic_params(key, state_dim, action_dim, hidden_dim):
    """Matches the module's init_weights(): kaiming_uniform_(nonlinearity='relu')
    (bound = sqrt(6/fan_in)) and zero biases.  Weights stored as [in, out] with
    W1 pre-split into its state / action row blocks."""
    def kaiming_uniform(k, fan_in, fan_out):
        bound = jnp.sqrt(6.0 / fan_in)
        return jax.random.uniform(k, (fan_in, fan_out), jnp.float32, -bound, bound)

    k1, k2, k3 = jax.random.split(key, 3)
    in_dim = state_dim + action_dim
    w1 = kaiming_uniform(k1, in_dim, hidden_dim)
    w1s, w1a = w1[:state_dim], w1[state_dim:]
    b1 = jnp.zeros((1, hidden_dim), jnp.float32)
    w2 = kaiming_uniform(k2, hidden_dim, hidden_dim)
    b2 = jnp.zeros((1, hidden_dim), jnp.float32)
    w3 = kaiming_uniform(k3, hidden_dim, 1)
    b3 = jnp.zeros((1, 1), jnp.float32)
    return (w1s, w1a, b1, w2, b2, w3, b3)


def reference_forward(state, action, params):
    w1s, w1a, b1, w2, b2, w3, b3 = params
    w1 = jnp.concatenate([w1s, w1a], axis=0)
    x = jnp.concatenate([state, action], axis=-1)
    h1 = jnp.maximum(x @ w1 + b1, 0.0)
    h2 = jnp.maximum(h1 @ w2 + b2, 0.0)
    return h2 @ w3 + b3


# TODO(synk): the Adam optimizer / training-step machinery of the PyTorch module
# has no kernel equivalent here; only the forward pass is implemented.

if __name__ == "__main__":
    # Case 1: CartPole-style sizes (state=4, action=1, hidden=32, batch=8).
    sd, ad, hd, batch = 4, 1, 32, 8
    key = jax.random.PRNGKey(0)
    kp, ks, ka = jax.random.split(key, 3)
    params = init_critic_params(kp, sd, ad, hd)
    state = jax.random.normal(ks, (batch, sd), jnp.float32)
    action = jax.random.normal(ka, (batch, ad), jnp.float32)
    q_ref = reference_forward(state, action, params)

    # exact f32 path (action FMA on the VPU)
    q_f32 = critic_forward(state, action, params, matmul_dtype=jnp.float32)
    jax.block_until_ready(q_f32)
    assert q_f32.shape == (batch, 1)
    assert jnp.allclose(q_f32, q_ref, atol=1e-4, rtol=1e-4), "f32 small-batch mismatch"

    # default path: bf16 MXU operands, f32 accumulation / elementwise
    q_bf16 = critic_forward(state, action, params)
    jax.block_until_ready(q_bf16)
    assert jnp.allclose(q_bf16, q_ref, atol=5e-2, rtol=5e-2), "bf16 small-batch mismatch"

    # forced dot-fallback path for the action term
    q_dot = critic_forward(state, action, params, matmul_dtype=jnp.float32,
                           action_fma_max=0)
    jax.block_until_ready(q_dot)
    assert jnp.allclose(q_dot, q_ref, atol=1e-4, rtol=1e-4), "action-dot path mismatch"

    # Case 2: larger ragged batch -> 2-step parallel grid, partial last block,
    # resident weights, no wrapper-side padding copy.
    sd2, ad2, hd2, bb2 = 6, 2, 128, 1000
    kp2, ks2, ka2 = jax.random.split(jax.random.PRNGKey(1), 3)
    params2 = init_critic_params(kp2, sd2, ad2, hd2)
    state2 = jax.random.normal(ks2, (bb2, sd2), jnp.float32)
    action2 = jax.random.normal(ka2, (bb2, ad2), jnp.float32)
    q2_ref = reference_forward(state2, action2, params2)

    q2_f32 = critic_forward(state2, action2, params2, matmul_dtype=jnp.float32)
    jax.block_until_ready(q2_f32)
    assert q2_f32.shape == (bb2, 1)
    assert jnp.allclose(q2_f32, q2_ref, atol=1e-3, rtol=1e-3), "f32 large-batch mismatch"

    q2_bf16 = critic_forward(state2, action2, params2)   # default bf16 + auto tile
    jax.block_until_ready(q2_bf16)
    assert jnp.allclose(q2_bf16, q2_ref, atol=1e-1, rtol=5e-2), "bf16 large-batch mismatch"

    # explicit small tile -> 4-step grid with a non-divisible tail block
    q2_t = critic_forward(state2, action2, params2, tile_b=256,
                          matmul_dtype=jnp.float32)
    jax.block_until_ready(q2_t)
    assert jnp.allclose(q2_t, q2_ref, atol=1e-3, rtol=1e-3), "partial-block mismatch"

    print("KERNEL_OK")
</pallas_src>

<mosaic_0001>
module attributes {stable_mosaic.version = 11 : i64} {
  func.func @critic_kernel(%arg0: i32, %arg1: memref<8x4xf32, #tpu.memory_space<vmem>>, %arg2: memref<8x1xf32, #tpu.memory_space<vmem>>, %arg3: memref<4x32xf32, #tpu.memory_space<vmem>>, %arg4: memref<1x32xf32, #tpu.memory_space<vmem>>, %arg5: memref<1x32xf32, #tpu.memory_space<vmem>>, %arg6: memref<32x32xf32, #tpu.memory_space<vmem>>, %arg7: memref<1x32xf32, #tpu.memory_space<vmem>>, %arg8: memref<1x32xf32, #tpu.memory_space<vmem>>, %arg9: memref<1x1xf32, #tpu.memory_space<smem>>, %arg10: memref<8x1xf32, #tpu.memory_space<vmem>>) attributes {dimension_semantics = [#tpu.dimension_semantics<parallel>], iteration_bounds = array<i64: 1>, scalar_prefetch = 0 : i64, scratch_operands = 0 : i64, tpu.core_type = #tpu.core_type<tc>, window_params = [{transform_indices = @transform_0, window_bounds = array<i64: 8, 4>}, {transform_indices = @transform_1, window_bounds = array<i64: 8, 1>}, {pipeline_mode = #tpu.pipeline_mode<synchronous>, transform_indices = @transform_2, window_bounds = array<i64: 4, 32>}, {pipeline_mode = #tpu.pipeline_mode<synchronous>, transform_indices = @transform_3, window_bounds = array<i64: 1, 32>}, {pipeline_mode = #tpu.pipeline_mode<synchronous>, transform_indices = @transform_4, window_bounds = array<i64: 1, 32>}, {pipeline_mode = #tpu.pipeline_mode<synchronous>, transform_indices = @transform_5, window_bounds = array<i64: 32, 32>}, {pipeline_mode = #tpu.pipeline_mode<synchronous>, transform_indices = @transform_6, window_bounds = array<i64: 1, 32>}, {pipeline_mode = #tpu.pipeline_mode<synchronous>, transform_indices = @transform_7, window_bounds = array<i64: 1, 32>}, {transform_indices = @transform_8, window_bounds = array<i64: 1, 1>}, {transform_indices = @transform_9, window_bounds = array<i64: 8, 1>}]} {
    %c0 = arith.constant 0 : index
    %c0_0 = arith.constant 0 : index
    %0 = vector.load %arg1[%c0, %c0_0] : memref<8x4xf32, #tpu.memory_space<vmem>>, vector<8x4xf32>
    %c0_1 = arith.constant 0 : index
    %c0_2 = arith.constant 0 : index
    %1 = vector.load %arg3[%c0_1, %c0_2] : memref<4x32xf32, #tpu.memory_space<vmem>>, vector<4x32xf32>
    %cst = arith.constant dense<0.000000e+00> : vector<8x32xf32>
    %2 = tpu.matmul %0, %1, %cst {dimension_numbers = #tpu.dot_dimension_numbers<[1], [0], [0], [1], [0, 0, 1, 1], [], []>} : vector<8x4xf32>, vector<4x32xf32>, vector<8x32xf32> -> vector<8x32xf32>
    %c0_3 = arith.constant 0 : index
    %c0_4 = arith.constant 0 : index
    %3 = vector.load %arg2[%c0_3, %c0_4] : memref<8x1xf32, #tpu.memory_space<vmem>>, vector<8x1xf32>
    %c0_5 = arith.constant 0 : index
    %c0_6 = arith.constant 0 : index
    %4 = vector.load %arg4[%c0_5, %c0_6] : memref<1x32xf32, #tpu.memory_space<vmem>>, vector<1x32xf32>
    %5 = vector.broadcast %3 : vector<8x1xf32> to vector<8x32xf32>
    %6 = vector.broadcast %4 : vector<1x32xf32> to vector<8x32xf32>
    %7 = arith.mulf %5, %6 : vector<8x32xf32>
    %8 = arith.addf %2, %7 : vector<8x32xf32>
    %c0_7 = arith.constant 0 : index
    %c0_8 = arith.constant 0 : index
    %9 = vector.load %arg5[%c0_7, %c0_8] : memref<1x32xf32, #tpu.memory_space<vmem>>, vector<1x32xf32>
    %10 = vector.broadcast %9 : vector<1x32xf32> to vector<8x32xf32>
    %11 = arith.addf %8, %10 : vector<8x32xf32>
    %cst_9 = arith.constant 0.000000e+00 : f32
    %12 = vector.broadcast %cst_9 : f32 to vector<8x32xf32>
    %13 = arith.maximumf %11, %12 : vector<8x32xf32>
    %c0_10 = arith.constant 0 : index
    %c0_11 = arith.constant 0 : index
    %14 = vector.load %arg6[%c0_10, %c0_11] : memref<32x32xf32, #tpu.memory_space<vmem>>, vector<32x32xf32>
    %cst_12 = arith.constant dense<0.000000e+00> : vector<8x32xf32>
    %15 = tpu.matmul %13, %14, %cst_12 {dimension_numbers = #tpu.dot_dimension_numbers<[1], [0], [0], [1], [0, 0, 1, 1], [], []>} : vector<8x32xf32>, vector<32x32xf32>, vector<8x32xf32> -> vector<8x32xf32>
    %c0_13 = arith.constant 0 : index
    %c0_14 = arith.constant 0 : index
    %16 = vector.load %arg7[%c0_13, %c0_14] : memref<1x32xf32, #tpu.memory_space<vmem>>, vector<1x32xf32>
    %17 = vector.broadcast %16 : vector<1x32xf32> to vector<8x32xf32>
    %18 = arith.addf %15, %17 : vector<8x32xf32>
    %cst_15 = arith.constant 0.000000e+00 : f32
    %19 = vector.broadcast %cst_15 : f32 to vector<8x32xf32>
    %20 = arith.maximumf %18, %19 : vector<8x32xf32>
    %c0_16 = arith.constant 0 : index
    %c0_17 = arith.constant 0 : index
    %21 = vector.load %arg8[%c0_16, %c0_17] : memref<1x32xf32, #tpu.memory_space<vmem>>, vector<1x32xf32>
    %22 = vector.broadcast %21 : vector<1x32xf32> to vector<8x32xf32>
    %23 = arith.mulf %20, %22 : vector<8x32xf32>
    %cst_18 = arith.constant dense<0.000000e+00> : vector<8xf32>
    %24 = vector.multi_reduction <add>, %23, %cst_18 [1] : vector<8x32xf32> to vector<8xf32>
    %25 = vector.shape_cast %24 : vector<8xf32> to vector<8x1xf32>
    %c0_19 = arith.constant 0 : index
    %c0_20 = arith.constant 0 : index
    %26 = memref.load %arg9[%c0_19, %c0_20] : memref<1x1xf32, #tpu.memory_space<smem>>
    %27 = vector.broadcast %26 : f32 to vector<8x1xf32>
    %28 = arith.addf %25, %27 : vector<8x1xf32>
    %c0_21 = arith.constant 0 : index
    %c0_22 = arith.constant 0 : index
    %29 = vector.load %arg10[%c0_21, %c0_22] : memref<8x1xf32, #tpu.memory_space<vmem>>, vector<8x1xf32>
    tpu.vector_store %arg10[%c0_21, %c0_22], %28 {strides = array<i32>} : memref<8x1xf32, #tpu.memory_space<vmem>>, vector<8x1xf32>,
    return
  }
  func.func @transform_0(%arg0: i32) -> (i32, i32) {
    %c0_i32 = arith.constant 0 : i32
    %c0_i32_0 = arith.constant 0 : i32
    return %arg0, %c0_i32 : i32, i32
  }
  func.func @transform_1(%arg0: i32) -> (i32, i32) {
    %c0_i32 = arith.constant 0 : i32
    %c0_i32_0 = arith.constant 0 : i32
    return %arg0, %c0_i32 : i32, i32
  }
  func.func @transform_2(%arg0: i32) -> (i32, i32) {
    %c0_i32 = arith.constant 0 : i32
    %c0_i32_0 = arith.constant 0 : i32
    %c0_i32_1 = arith.constant 0 : i32
    return %c0_i32, %c0_i32_0 : i32, i32
  }
  func.func @transform_3(%arg0: i32) -> (i32, i32) {
    %c0_i32 = arith.constant 0 : i32
    %c0_i32_0 = arith.constant 0 : i32
    %c0_i32_1 = arith.constant 0 : i32
    return %c0_i32, %c0_i32_0 : i32, i32
  }
  func.func @transform_4(%arg0: i32) -> (i32, i32) {
    %c0_i32 = arith.constant 0 : i32
    %c0_i32_0 = arith.constant 0 : i32
    %c0_i32_1 = arith.constant 0 : i32
    return %c0_i32, %c0_i32_0 : i32, i32
  }
  func.func @transform_5(%arg0: i32) -> (i32, i32) {
    %c0_i32 = arith.constant 0 : i32
    %c0_i32_0 = arith.constant 0 : i32
    %c0_i32_1 = arith.constant 0 : i32
    return %c0_i32, %c0_i32_0 : i32, i32
  }
  func.func @transform_6(%arg0: i32) -> (i32, i32) {
    %c0_i32 = arith.constant 0 : i32
    %c0_i32_0 = arith.constant 0 : i32
    %c0_i32_1 = arith.constant 0 : i32
    return %c0_i32, %c0_i32_0 : i32, i32
  }
  func.func @transform_7(%arg0: i32) -> (i32, i32) {
    %c0_i32 = arith.constant 0 : i32
    %c0_i32_0 = arith.constant 0 : i32
    %c0_i32_1 = arith.constant 0 : i32
    return %c0_i32, %c0_i32_0 : i32, i32
  }
  func.func @transform_8(%arg0: i32) -> (i32, i32) {
    %c0_i32 = arith.constant 0 : i32
    %c0_i32_0 = arith.constant 0 : i32
    %c0_i32_1 = arith.constant 0 : i32
    return %c0_i32, %c0_i32_0 : i32, i32
  }
  func.func @transform_9(%arg0: i32) -> (i32, i32) {
    %c0_i32 = arith.constant 0 : i32
    %c0_i32_0 = arith.constant 0 : i32
    return %arg0, %c0_i32 : i32, i32
  }
}

</mosaic_0001>

<llo_original>
// kernel: tpu_custom_call.1
$region0: #{tpu_custom_call.1}
  #allocation0 [shape = 'u32[]', space=smem, size = 0x4, offset = 0x4, fixed_abs, tag = 'smem constant byte address 0x4 - core index']
  #allocation1 [shape = 'u32[144,128]{1,0:T(1,128)}', space=vmem, size = 0x12000, scoped, tag = 'internal scratch']
  #allocation2 [shape = 'f32[1,1]{1,0:T(1,128)S(6)}', space=smem, size = 0x200, scoped, tag = 'scoped memory for tpu_custom_call.1']
  %s0 = inlined_call_operand.vmem [shape: f32[8,4], index: 0, kind: input, shape index: {}]
  %s1 = inlined_call_operand.vmem [shape: f32[8,1], index: 1, kind: input, shape index: {}]
  %s2 = inlined_call_operand.vmem [shape: f32[4,32], index: 2, kind: input, shape index: {}]
  %s3 = inlined_call_operand.vmem [shape: f32[1,32], index: 3, kind: input, shape index: {}]
  %s4 = inlined_call_operand.vmem [shape: f32[1,32], index: 4, kind: input, shape index: {}]
  %s5 = inlined_call_operand.vmem [shape: f32[32,32], index: 5, kind: input, shape index: {}]
  %s6 = inlined_call_operand.vmem [shape: f32[1,32], index: 6, kind: input, shape index: {}]
  %s7 = inlined_call_operand.vmem [shape: f32[1,32], index: 7, kind: input, shape index: {}]
  %s8 = inlined_call_operand.<no memory space> [shape: f32[1,1], index: 8, kind: input, shape index: {}]
  %s9 = inlined_call_operand.vmem [shape: f32[8,1], index: 9, kind: output, shape index: {}]
  %s10 = sld [smem:[#allocation0]]
  $region46: #{tpu_custom_call.1} parent=0
    _
  %s12 = ssub.s32 1, %s10
  %s13 = scalar_select 0, %s12, %s10
  %14 = sst [smem:[#allocation2]] %s8
  // Predicated region
  $region2: #{tpu_custom_call.1} parent=0 // pred_check
    _
  $region3: #{tpu_custom_call.1} parent=0 // pred_check_branch
    %16 = sbr.rel (0) target = $region5
  $region4: #{tpu_custom_call.1} parent=0 // pred_region
    _
  $region5: #{tpu_custom_call.1} parent=0 // pred_fallthru
    _
  // Predicated region
  $region6: #{tpu_custom_call.1} parent=0 // pred_check
    _
  $region7: #{tpu_custom_call.1} parent=0 // pred_check_branch
    %18 = sbr.rel (0) target = $region9
  $region8: #{tpu_custom_call.1} parent=0 // pred_region
    _
  $region9: #{tpu_custom_call.1} parent=0 // pred_fallthru
    _
  // Predicated region
  $region10: #{tpu_custom_call.1} parent=0 // pred_check
    _
  $region11: #{tpu_custom_call.1} parent=0 // pred_check_branch
    %20 = sbr.rel (0) target = $region13
  $region12: #{tpu_custom_call.1} parent=0 // pred_region
    _
  $region13: #{tpu_custom_call.1} parent=0 // pred_fallthru
    _
  // Predicated region
  $region14: #{tpu_custom_call.1} parent=0 // pred_check
    _
  $region15: #{tpu_custom_call.1} parent=0 // pred_check_branch
    %22 = sbr.rel (0) target = $region17
  $region16: #{tpu_custom_call.1} parent=0 // pred_region
    _
  $region17: #{tpu_custom_call.1} parent=0 // pred_fallthru
    _
  // Predicated region
  $region18: #{tpu_custom_call.1} parent=0 // pred_check
    _
  $region19: #{tpu_custom_call.1} parent=0 // pred_check_branch
    %24 = sbr.rel (0) target = $region21
  $region20: #{tpu_custom_call.1} parent=0 // pred_region
    _
  $region21: #{tpu_custom_call.1} parent=0 // pred_fallthru
    _
  // Predicated region
  $region22: #{tpu_custom_call.1} parent=0 // pred_check
    _
  $region23: #{tpu_custom_call.1} parent=0 // pred_check_branch
    %26 = sbr.rel (0) target = $region25
  $region24: #{tpu_custom_call.1} parent=0 // pred_region
    _
  $region25: #{tpu_custom_call.1} parent=0 // pred_fallthru
    _
  // Predicated region
  $region26: #{tpu_custom_call.1} parent=0 // pred_check
    _
  $region27: #{tpu_custom_call.1} parent=0 // pred_check_branch
    %28 = sbr.rel (0) target = $region29
  $region28: #{tpu_custom_call.1} parent=0 // pred_region
    _
  $region29: #{tpu_custom_call.1} parent=0 // pred_fallthru
    _
  // Predicated region
  $region30: #{tpu_custom_call.1} parent=0 // pred_check
    _
  $region31: #{tpu_custom_call.1} parent=0 // pred_check_branch
    %30 = sbr.rel (0) target = $region33
  $region32: #{tpu_custom_call.1} parent=0 // pred_region
    _
  $region33: #{tpu_custom_call.1} parent=0 // pred_fallthru
    _
  // Predicated region
  $region34: #{tpu_custom_call.1} parent=0 // pred_check
    _
  $region35: #{tpu_custom_call.1} parent=0 // pred_check_branch
    %32 = sbr.rel (0) target = $region37
  $region36: #{tpu_custom_call.1} parent=0 // pred_region
    _
  $region37: #{tpu_custom_call.1} parent=0 // pred_fallthru
    _
  %v33 = vld [vmem:[%s0] sm:$0xff]
  %v34 = vld [vmem:[%s2] sm:$0xf]
  %v35 = vld [vmem:[%s1] sm:$0xff]
  %v36 = vld [vmem:[%s3] sm:$0x1]
  %38 = vset.pattern.permute.xlu0 0
  %39 = vperm.xlu0 %38, %v35
  %v40 = vpop.permute.xlu0 %39
  %v43 = vlaneseq
  %v44 = vshrl.u32 %v43, 7
  %v45 = vsub.s32 0, %v44
  %v46 = vrot.slane %v36, %v45
  %v48 = vmul.f32 %v40, %v46
  %vm49 = vcmask 31744
  %v51 = vsel %vm49, %v33, 0
  %vm53 = vcmask 1043456
  %v55 = vsel %vm53, %v34, 0
  %57 = vmatprep.subr.mxu0 0.0
  %58 = vmatpush1.msra.mxu0 %v55
  %59 = vmatprep.subr.mxu0 0.0
  %60 = vmatpush1.msra.mxu0 0.0
  %61 = vmatprep.subr.mxu0 0.0
  %62 = vmatpush1.msra.mxu0 0.0
  %63 = vmatprep.subr.mxu0 0.0
  %64 = vmatpush1.msra.mxu0 0.0
  %65 = vmatprep.subr.mxu0 0.0
  %66 = vmatpush1.msra.mxu0 0.0
  %67 = vmatprep.subr.mxu0 0.0
  %68 = vmatpush1.msra.mxu0 0.0
  %69 = vmatprep.subr.mxu0 0.0
  %70 = vmatpush1.msra.mxu0 0.0
  %71 = vmatprep.subr.mxu0 0.0
  %72 = vmatpush1.msra.mxu0 0.0
  %73 = vmatprep.subr.mxu0 0.0
  %74 = vmatpush1.msra.mxu0 0.0
  %75 = vmatprep.subr.mxu0 0.0
  %76 = vmatpush1.msra.mxu0 0.0
  %77 = vmatprep.subr.mxu0 0.0
  %78 = vmatpush1.msra.mxu0 0.0
  %79 = vmatprep.subr.mxu0 0.0
  %80 = vmatpush1.msra.mxu0 0.0
  %81 = vmatprep.subr.mxu0 0.0
  %82 = vmatpush1.msra.mxu0 0.0
  %83 = vmatprep.subr.mxu0 0.0
  %84 = vmatpush1.msra.mxu0 0.0
  %85 = vmatprep.subr.mxu0 0.0
  %86 = vmatpush1.msra.mxu0 0.0
  %87 = vmatprep.subr.mxu0 0.0
  %88 = vmatpush1.msra.mxu0 0.0
  %89 = vmatprep.subr.mxu0 0.0
  %90 = vmatpush1.msra.mxu0 0.0
  %91 = vmatprep.subr.mxu0 0.0
  %92 = vmatpush1.msra.mxu0 0.0
  %93 = vmatprep.subr.mxu0 0.0
  %94 = vmatpush1.msra.mxu0 0.0
  %95 = vmatprep.subr.mxu0 0.0
  %96 = vmatpush1.msra.mxu0 0.0
  %97 = vmatprep.subr.mxu0 0.0
  %98 = vmatpush1.msra.mxu0 0.0
  %99 = vmatprep.subr.mxu0 0.0
  %100 = vmatpush1.msra.mxu0 0.0
  %101 = vmatprep.subr.mxu0 0.0
  %102 = vmatpush1.msra.mxu0 0.0
  %103 = vmatprep.subr.mxu0 0.0
  %104 = vmatpush1.msra.mxu0 0.0
  %105 = vmatprep.subr.mxu0 0.0
  %106 = vmatpush1.msra.mxu0 0.0
  %107 = vmatprep.subr.mxu0 0.0
  %108 = vmatpush1.msra.mxu0 0.0
  %109 = vmatprep.subr.mxu0 0.0
  %110 = vmatpush1.msra.mxu0 0.0
  %111 = vmatprep.subr.mxu0 0.0
  %112 = vmatpush1.msra.mxu0 0.0
  %113 = vmatprep.subr.mxu0 0.0
  %114 = vmatpush1.msra.mxu0 0.0
  %115 = vmatprep.subr.mxu0 0.0
  %116 = vmatpush1.msra.mxu0 0.0
  %117 = vmatprep.subr.mxu0 0.0
  %118 = vmatpush1.msra.mxu0 0.0
  %119 = vmatprep.subr.mxu0 0.0
  %120 = vmatpush1.msra.mxu0 0.0
  %121 = vmatprep.mubr.f32.mxu0 0.0
  %122 = vmatmul.mubr.f32.gmra.mrb[0].mxu0 %v51
  %v123 = vpop.f32.mrb[0].mxu0
  %v124 = vadd.f32 %v48, %v123
  %v125 = vpop.f32.mrb[0].mxu0
  %126 = vdwg.mxu0
  %v127 = vld [vmem:[%s4] sm:$0x1]
  %v129 = vlaneseq
  %v130 = vshrl.u32 %v129, 7
  %v131 = vsub.s32 0, %v130
  %v132 = vrot.slane %v127, %v131
  %v134 = vadd.f32 %v124, %v132
  %v135 = vmax.f32 %v134, 0.0
  %v136 = vld [vmem:[%s5] sm:$0xff]
  %v137 = vld [vmem:[%s5 + $0x8] sm:$0xff]
  %v138 = vld [vmem:[%s5 + $0x10] sm:$0xff]
  %v139 = vld [vmem:[%s5 + $0x18] sm:$0xff]
  %v140 = vld [vmem:[%s6] sm:$0x1]
  %v142 = vlaneseq
  %v143 = vshrl.u32 %v142, 7
  %v144 = vsub.s32 0, %v143
  %v145 = vrot.slane %v140, %v144
  %vm147 = vcmask 261120
  %v149 = vsel %vm147, %v135, 0
  %151 = vmatprep.subr.mxu0 0.0
  %152 = vmatpush1.msra.mxu0 %v136
  %153 = vmatprep.subr.mxu0 0.0
  %154 = vmatpush1.msra.mxu0 %v137
  %155 = vmatprep.subr.mxu0 0.0
  %156 = vmatpush1.msra.mxu0 %v138
  %157 = vmatprep.subr.mxu0 0.0
  %158 = vmatpush1.msra.mxu0 %v139
  %159 = vmatprep.subr.mxu0 0.0
  %160 = vmatpush1.msra.mxu0 0.0
  %161 = vmatprep.subr.mxu0 0.0
  %162 = vmatpush1.msra.mxu0 0.0
  %163 = vmatprep.subr.mxu0 0.0
  %164 = vmatpush1.msra.mxu0 0.0
  %165 = vmatprep.subr.mxu0 0.0
  %166 = vmatpush1.msra.mxu0 0.0
  %167 = vmatprep.subr.mxu0 0.0
  %168 = vmatpush1.msra.mxu0 0.0
  %169 = vmatprep.subr.mxu0 0.0
  %170 = vmatpush1.msra.mxu0 0.0
  %171 = vmatprep.subr.mxu0 0.0
  %172 = vmatpush1.msra.mxu0 0.0
  %173 = vmatprep.subr.mxu0 0.0
  %174 = vmatpush1.msra.mxu0 0.0
  %175 = vmatprep.subr.mxu0 0.0
  %176 = vmatpush1.msra.mxu0 0.0
  %177 = vmatprep.subr.mxu0 0.0
  %178 = vmatpush1.msra.mxu0 0.0
  %179 = vmatprep.subr.mxu0 0.0
  %180 = vmatpush1.msra.mxu0 0.0
  %181 = vmatprep.subr.mxu0 0.0
  %182 = vmatpush1.msra.mxu0 0.0
  %183 = vmatprep.subr.mxu0 0.0
  %184 = vmatpush1.msra.mxu0 0.0
  %185 = vmatprep.subr.mxu0 0.0
  %186 = vmatpush1.msra.mxu0 0.0
  %187 = vmatprep.subr.mxu0 0.0
  %188 = vmatpush1.msra.mxu0 0.0
  %189 = vmatprep.subr.mxu0 0.0
  %190 = vmatpush1.msra.mxu0 0.0
  %191 = vmatprep.subr.mxu0 0.0
  %192 = vmatpush1.msra.mxu0 0.0
  %193 = vmatprep.subr.mxu0 0.0
  %194 = vmatpush1.msra.mxu0 0.0
  %195 = vmatprep.subr.mxu0 0.0
  %196 = vmatpush1.msra.mxu0 0.0
  %197 = vmatprep.subr.mxu0 0.0
  %198 = vmatpush1.msra.mxu0 0.0
  %199 = vmatprep.subr.mxu0 0.0
  %200 = vmatpush1.msra.mxu0 0.0
  %201 = vmatprep.subr.mxu0 0.0
  %202 = vmatpush1.msra.mxu0 0.0
  %203 = vmatprep.subr.mxu0 0.0
  %204 = vmatpush1.msra.mxu0 0.0
  %205 = vmatprep.subr.mxu0 0.0
  %206 = vmatpush1.msra.mxu0 0.0
  %207 = vmatprep.subr.mxu0 0.0
  %208 = vmatpush1.msra.mxu0 0.0
  %209 = vmatprep.subr.mxu0 0.0
  %210 = vmatpush1.msra.mxu0 0.0
  %211 = vmatprep.subr.mxu0 0.0
  %212 = vmatpush1.msra.mxu0 0.0
  %213 = vmatprep.subr.mxu0 0.0
  %214 = vmatpush1.msra.mxu0 0.0
  %215 = vmatprep.mubr.f32.mxu0 0.0
  %216 = vmatmul.mubr.f32.gmra.mrb[0].mxu0 %v149
  %v217 = vpop.f32.mrb[0].mxu0
  %v218 = vadd.f32 %v145, %v217
  %v219 = vpop.f32.mrb[0].mxu0
  %220 = vdwg.mxu0
  %v221 = vmax.f32 %v218, 0.0
  %v222 = vld [vmem:[%s7] sm:$0x1]
  %v224 = vlaneseq
  %v225 = vshrl.u32 %v224, 7
  %v226 = vsub.s32 0, %v225
  %v227 = vrot.slane %v222, %v226
  %v229 = vmul.f32 %v221, %v227
  %v230 = vsel %vm147, %v229, 0.0
  %231 = vadd.xlane.f32.xlu0 %v230
  %v232 = vpop.xlane.xlu0 %231
  %s233 = sld [smem:[#allocation2]]
  %v234 = vstv %s233
  %v235 = vadd.f32 %v232, %v234
  %vm236 = vcmask 7168
  %237 = vst.msk [vmem:[%s9] sm:$0xff] %vm236, %v235
  // Predicated region
  $region38: #{tpu_custom_call.1} parent=0 // pred_check
    _
  $region39: #{tpu_custom_call.1} parent=0 // pred_check_branch
    %239 = sbr.rel (0) target = $region41
  $region40: #{tpu_custom_call.1} parent=0 // pred_region
    _
  $region41: #{tpu_custom_call.1} parent=0 // pred_fallthru
    _
  // Predicated region
  $region42: #{tpu_custom_call.1} parent=0 // pred_check
    _
  $region43: #{tpu_custom_call.1} parent=0 // pred_check_branch
    %241 = sbr.rel (0) target = $region45
  $region44: #{tpu_custom_call.1} parent=0 // pred_region
    _
  $region45: #{tpu_custom_call.1} parent=0 // pred_fallthru
    _

</llo_original>
